<compile_context>
chip_gen: v7x
topology: tpu7x:2x2x1
jax: 0.10.0
libtpu: 0.0.40
codegen_flags: <defaults>
</compile_context>

<pallas_src>
import dataclasses
import functools
from typing import Dict, Optional, Sequence, Union

import jax
import jax.numpy as jnp
from jax.experimental import pallas as pl
from jax.experimental.pallas import tpu as pltpu


# ----------------------------- configuration --------------------------------
@dataclasses.dataclass
class LossConfiguration:
    num_classes: int = 4
    xent_weight: float = 1.0
    dice_weight: float = 0.5
    focal_loss: bool = True
    focal_loss_gamma: float = 2.0
    class_weights: Optional[Union[Sequence[float], bool]] = None
    requires_frustrum: bool = True
    requires_flood_mask: bool = True
    label_smoothing: float = 0.1


# ------------------------------- Pallas kernel ------------------------------
def _sublane_fold(s):
    """(1, k, 128) -> (1, 8, 128): fold groups of 8 sublanes with aligned static
    slices and plain vector adds (no XLU, no reshape)."""
    k = s.shape[1]
    acc = s[:, 0:8, :]
    for i in range(1, k // 8):
        acc = acc + s[:, 8 * i:8 * (i + 1), :]
    return acc


def _enhanced_loss_kernel(
    *refs,
    label_smoothing: float,
    num_classes: int,
    focal: bool,
    focal_gamma: float,
    smooth: float,
    class_weights_norm,      # tuple of python floats, already normalized (sums to 1)
    use_probs_input: bool,
    approx_recip: bool,
):
    if use_probs_input:
        logits_ref, probs_ref, labels_ref, mask_ref, xent_ref, dice_ref, msum_ref = refs
    else:
        logits_ref, labels_ref, mask_ref, xent_ref, dice_ref, msum_ref = refs
        probs_ref = None

    @pl.when(pl.program_id(1) == 0)
    def _init():
        xent_ref[...] = jnp.zeros_like(xent_ref)
        dice_ref[...] = jnp.zeros_like(dice_ref)
        msum_ref[...] = jnp.zeros_like(msum_ref)

    x_all = logits_ref[...]                            # (1, C, k, 128) f32
    p_all = probs_ref[...] if use_probs_input else None
    lab = labels_ref[...][:, 0]                        # (1, k, 128) int32 class indices
    m = mask_ref[...][:, 0]                            # (1, k, 128) f32

    ncls = x_all.shape[1]
    xent_s = None
    dice_s = None
    for ci in range(ncls):                             # C is small; unrolled per-class loop
        x = x_all[:, ci]                               # (1, k, 128)
        y = (lab == ci).astype(jnp.float32)            # in-kernel one-hot (VALU compare)

        # ---- BCE-with-logits + label smoothing (stable form) ----
        if label_smoothing > 0.0:
            y_ce = y * (1.0 - label_smoothing) + (label_smoothing / num_classes)
        else:
            y_ce = y
        bce = jnp.maximum(x, 0.0) - x * y_ce + jnp.log(1.0 + jnp.exp(-jnp.abs(x)))
        if focal:
            pt = jnp.exp(-bce)
            omp = 1.0 - pt
            gma = float(focal_gamma)
            if gma == float(int(gma)) and 1 <= int(gma) <= 4:
                w = omp
                for _ in range(int(gma) - 1):          # integer gamma -> repeated multiply
                    w = w * omp
            else:
                w = jnp.power(omp, gma)
            bce = w * bce
        xent_s = bce if xent_s is None else xent_s + bce

        # ---- dice ----
        if use_probs_input:
            p = p_all[:, ci]
        else:
            p = 1.0 / (1.0 + jnp.exp(-x))              # sigmoid in-kernel (drops probs HBM stream)
        union = p + y + smooth
        r = pl.reciprocal(union, approx=approx_recip)  # single EUP op instead of f32 divide
        dl = 1.0 - (2.0 * p * y + smooth) * r
        dl = dl * class_weights_norm[ci]               # static normalized class weight
        dice_s = dl if dice_s is None else dice_s + dl

    # lane-dense accumulation: pure vector adds into resident (1, 8, 128) accumulators
    xent_ref[...] += _sublane_fold(xent_s * m)
    dice_ref[...] += _sublane_fold(dice_s * m)
    msum_ref[...] += _sublane_fold(m)


# ------------------------------ kernel launcher -------------------------------
def _tpu_block_tuning(c: int):
    """Per-generation block size / VMEM limit (v5e/v6e: 128 MiB VMEM, v7x: 64 MiB)."""
    vmem_cap = None
    try:
        info = pltpu.get_tpu_info()
        vmem_cap = getattr(info, "vmem_capacity_bytes", None)
    except Exception:
        vmem_cap = None
    if vmem_cap is None:
        vmem_cap = 64 * 1024 * 1024                    # conservative (v7x-sized)
    if vmem_cap >= 100 * 1024 * 1024:                  # v5e / v6e
        return 2 * 1024 * 1024, 64 * 1024 * 1024
    return 1 * 1024 * 1024, 32 * 1024 * 1024           # v7x


def _run_loss_sums(logits, probs, labels_idx, mask, cfg, cw_norm_tuple,
                   approx_recip=True):
    """logits/(probs): (B, C, HW) f32; labels_idx: (B, HW) i32; mask: (B, HW) f32.
    Returns (xent_sum, dice_sum, mask_sum) scalars."""
    b, c, hw = logits.shape
    use_probs = probs is not None

    target_block_bytes, vmem_limit = _tpu_block_tuning(c)

    # --- lane- AND sublane-dense tiling: pixels -> (S, 128) with S a multiple of 8 ---
    t_pix = max(1024, (target_block_bytes // (4 * c) // 1024) * 1024)   # tile pixels, mult of 8*128
    hw_ceil = ((hw + 1023) // 1024) * 1024
    t_hw = min(t_pix, hw_ceil)
    hw_pad = ((hw + t_hw - 1) // t_hw) * t_hw
    pad = hw_pad - hw
    if pad:
        # padded pixels carry mask=0 -> contribute exactly zero to every sum
        logits = jnp.pad(logits, ((0, 0), (0, 0), (0, pad)))
        if use_probs:
            probs = jnp.pad(probs, ((0, 0), (0, 0), (0, pad)))
        labels_idx = jnp.pad(labels_idx, ((0, 0), (0, pad)))
        mask = jnp.pad(mask, ((0, 0), (0, pad)))

    s = hw_pad // 128            # sublane extent (multiple of 8)
    k = t_hw // 128              # sublanes per block (multiple of 8)
    n_hw = hw_pad // t_hw

    logits4 = logits.reshape(b, c, s, 128)
    probs4 = probs.reshape(b, c, s, 128) if use_probs else None
    labels4 = labels_idx.reshape(b, 1, s, 128)
    mask4 = mask.reshape(b, 1, s, 128)

    # Keep the outer ("parallel") extent even when possible so v7x's two TensorCores
    # are balanced even for odd / size-1 batch.
    g = 2 if (b % 2 == 1 and n_hw >= 2 and n_hw % 2 == 0) else 1
    n_outer = b * g
    n_inner = n_hw // g

    if g == 1:
        data_idx = lambda o, j: (o, 0, j, 0)
    else:
        data_idx = lambda o, j: (o // 2, 0, (o % 2) * n_inner + j, 0)
    out_idx = lambda o, j: (o, 0, 0)

    kernel = functools.partial(
        _enhanced_loss_kernel,
        label_smoothing=float(cfg.label_smoothing),
        num_classes=int(cfg.num_classes),
        focal=bool(cfg.focal_loss),
        focal_gamma=float(cfg.focal_loss_gamma),
        smooth=1e-05,
        class_weights_norm=cw_norm_tuple,
        use_probs_input=use_probs,
        approx_recip=approx_recip,
    )

    big_spec = pl.BlockSpec((1, c, k, 128), data_idx)
    small_spec = pl.BlockSpec((1, 1, k, 128), data_idx)
    in_specs = [big_spec] + ([big_spec] if use_probs else []) + [small_spec, small_spec]
    args = (logits4,) + ((probs4,) if use_probs else ()) + (labels4, mask4)

    grid_spec = pltpu.PrefetchScalarGridSpec(
        num_scalar_prefetch=0,
        grid=(n_outer, n_inner),
        in_specs=in_specs,
        out_specs=[pl.BlockSpec((1, 8, 128), out_idx)] * 3,
    )

    xent_p, dice_p, msum_p = pl.pallas_call(
        kernel,
        grid_spec=grid_spec,
        out_shape=[jax.ShapeDtypeStruct((n_outer, 8, 128), jnp.float32)] * 3,
        compiler_params=pltpu.CompilerParams(
            dimension_semantics=("parallel", "arbitrary"),
            vmem_limit_bytes=vmem_limit,
        ),
    )(*args)

    # tiny lane-dense partials -> scalars in plain JAX
    return jnp.sum(xent_p), jnp.sum(dice_p), jnp.sum(msum_p)


# ------------------------------ module wrapper -------------------------------
def _normalized_class_weights(cfg: LossConfiguration, num_classes: int):
    cw = cfg.class_weights
    if cw is None or cw is False:
        vals = [1.0] * num_classes
    elif cw is True:
        # TODO(synk): class_weights==True dynamic per-batch weighting path not implemented.
        vals = [1.0] * num_classes
    else:
        vals = [float(v) for v in cw]
        assert len(vals) == num_classes
    tot = sum(vals)
    return tuple(v / tot for v in vals)


def enhanced_loss(pred: Dict[str, jnp.ndarray],
                  data: Dict[str, jnp.ndarray],
                  cfg: LossConfiguration,
                  *,
                  probs_from_logits: bool = False,
                  approx_recip: bool = True) -> Dict[str, jnp.ndarray]:
    """Mirrors EnhancedLoss.forward (PyTorch NCHW inputs).

    probs_from_logits=True drops the probs HBM stream and computes sigmoid(logits)
    in-kernel; only valid when pred["output"] == sigmoid(pred["logits"])."""
    if cfg.xent_weight == 0.0 and cfg.dice_weight == 0.0:
        raise ValueError("At least one of xent_weight and dice_weight must be greater than 0.")

    b, c, h, w = pred["output"].shape
    hw = h * w

    # logits stay channels-first (free reshape, no HBM relayout).
    logits = pred["logits"].astype(jnp.float32).reshape(b, c, hw)
    if probs_from_logits:
        probs = None
    else:
        probs = pred["output"].astype(jnp.float32).reshape(b, c, hw)

    # labels: one-hot -> class indices (4 B/px instead of C*4 B/px; no transpose).
    # TODO(synk): assumes strictly one-hot seg_masks (per module contract); soft labels unsupported.
    labels_idx = jnp.argmax(data["seg_masks"], axis=-1).astype(jnp.int32).reshape(b, hw)

    loss_mask = jnp.ones((b, h, w), jnp.float32)
    if cfg.requires_frustrum:
        frustrum = (pred["valid_bev"][..., :-1] != 0).astype(jnp.float32)
        loss_mask = loss_mask * frustrum
    if cfg.requires_flood_mask:
        flood = (data["flood_masks"] == 0).astype(jnp.float32)
        loss_mask = loss_mask * flood
    mask = loss_mask.reshape(b, hw)

    cw_norm = _normalized_class_weights(cfg, c)

    xent_sum, dice_sum, mask_sum = _run_loss_sums(
        logits, probs, labels_idx, mask, cfg, cw_norm, approx_recip=approx_recip)

    loss = {}
    if cfg.xent_weight > 0.0:
        xent = xent_sum / (mask_sum + 1e-05)
        loss["cross_entropy"] = xent
        loss["total"] = xent * cfg.xent_weight
    if cfg.dice_weight > 0.0:
        dloss = dice_sum / mask_sum          # no epsilon, matches the reference module
        loss["dice"] = dloss
        loss["total"] = loss.get("total", 0.0) + dloss * cfg.dice_weight
    return loss


# ------------------------------ pure-JAX reference ---------------------------
def reference_loss(pred, data, cfg: LossConfiguration):
    probs = jnp.transpose(pred["output"], (0, 2, 3, 1)).astype(jnp.float32)
    logits = jnp.transpose(pred["logits"], (0, 2, 3, 1)).astype(jnp.float32)
    labels = data["seg_masks"].astype(jnp.float32)

    loss_mask = jnp.ones(labels.shape[:3], jnp.float32)
    if cfg.requires_frustrum:
        loss_mask = loss_mask * (pred["valid_bev"][..., :-1] != 0).astype(jnp.float32)
    if cfg.requires_flood_mask:
        loss_mask = loss_mask * (data["flood_masks"] == 0).astype(jnp.float32)

    out = {}
    if cfg.xent_weight > 0.0:
        y = labels
        if cfg.label_smoothing > 0.0:
            y = y * (1 - cfg.label_smoothing) + cfg.label_smoothing / cfg.num_classes
        x = logits
        bce = jnp.maximum(x, 0.0) - x * y + jnp.log(1.0 + jnp.exp(-jnp.abs(x)))
        if cfg.focal_loss:
            pt = jnp.exp(-bce)
            bce = (1.0 - pt) ** cfg.focal_loss_gamma * bce
        bce = bce * loss_mask[..., None]
        xent = bce.sum() / (loss_mask.sum() + 1e-05)
        out["cross_entropy"] = xent
        out["total"] = xent * cfg.xent_weight
    if cfg.dice_weight > 0.0:
        cw = cfg.class_weights
        if cw is None or cw is False or cw is True:
            cw = jnp.ones((labels.shape[-1],), jnp.float32)
        else:
            cw = jnp.asarray(cw, jnp.float32)
        smooth = 1e-05
        intersect = 2.0 * probs * labels + smooth
        union = probs + labels + smooth
        dl = (1.0 - intersect / union) * cw                         # (B,H,W,C)
        dl = dl.sum(-1) / cw.sum()
        dl = dl * loss_mask
        d = dl.sum() / loss_mask.sum()
        out["dice"] = d
        out["total"] = out.get("total", 0.0) + d * cfg.dice_weight
    return out


# ----------------------------------- main ------------------------------------
if __name__ == "__main__":
    key = jax.random.PRNGKey(0)
    B, C, H, W = 2, 4, 16, 16
    k1, k2, k3, k4 = jax.random.split(key, 4)

    logits_nchw = jax.random.normal(k1, (B, C, H, W), jnp.float32)
    probs_nchw = jax.nn.sigmoid(logits_nchw)                        # per-class probabilities
    # valid_bev has one extra trailing column (forward slices [..., :-1])
    valid_bev = (jax.random.uniform(k2, (B, H, W + 1)) > 0.2).astype(jnp.float32)
    cls_idx = jax.random.randint(k3, (B, H, W), 0, C)
    seg_masks = jax.nn.one_hot(cls_idx, C, dtype=jnp.float32)       # (B,H,W,C) one-hot GT
    flood_masks = (jax.random.uniform(k4, (B, H, W)) > 0.85).astype(jnp.int32)

    cfg = LossConfiguration(
        num_classes=C,
        xent_weight=1.0,
        dice_weight=0.5,
        focal_loss=True,
        focal_loss_gamma=2.0,
        class_weights=(1.0, 2.0, 0.5, 1.5),
        requires_frustrum=True,
        requires_flood_mask=True,
        label_smoothing=0.1,
    )

    pred = {"output": probs_nchw, "logits": logits_nchw, "valid_bev": valid_bev}
    data = {"seg_masks": seg_masks, "flood_masks": flood_masks}

    ref = reference_loss(pred, data, cfg)

    # Primary (fast) path: probs stream dropped, sigmoid computed in-kernel
    # (valid here since pred["output"] == sigmoid(pred["logits"])).
    out_fast = jax.block_until_ready(enhanced_loss(pred, data, cfg, probs_from_logits=True))
    # Semantics-preserving path: probs fed explicitly (original module contract).
    out_probs = jax.block_until_ready(enhanced_loss(pred, data, cfg, probs_from_logits=False))

    def _check(out):
        # cross_entropy is exact-math; dice/total use the approx EUP reciprocal,
        # so allow a slightly looser (still tight) tolerance there.
        tol = {"cross_entropy": 1e-4, "dice": 1e-3, "total": 1e-3}
        for name in ("cross_entropy", "dice", "total"):
            got, want = float(out[name]), float(ref[name])
            assert abs(got - want) <= tol[name] + tol[name] * abs(want), (name, got, want)

    _check(out_fast)
    _check(out_probs)

    print("KERNEL_OK")
</pallas_src>

<mosaic_0001>
module attributes {stable_mosaic.version = 11 : i64} {
  func.func @_enhanced_loss_kernel(%arg0: i32, %arg1: i32, %arg2: memref<1x4x8x128xf32, #tpu.memory_space<vmem>>, %arg3: memref<1x1x8x128xi32, #tpu.memory_space<vmem>>, %arg4: memref<1x1x8x128xf32, #tpu.memory_space<vmem>>, %arg5: memref<1x8x128xf32, #tpu.memory_space<vmem>>, %arg6: memref<1x8x128xf32, #tpu.memory_space<vmem>>, %arg7: memref<1x8x128xf32, #tpu.memory_space<vmem>>) attributes {dimension_semantics = [#tpu.dimension_semantics<parallel>, #tpu.dimension_semantics<arbitrary>], iteration_bounds = array<i64: 2, 1>, scalar_prefetch = 0 : i64, scratch_operands = 0 : i64, tpu.core_type = #tpu.core_type<tc>, window_params = [{transform_indices = @transform_0, window_bounds = array<i64: 1, 4, 8, 128>}, {transform_indices = @transform_1, window_bounds = array<i64: 1, 1, 8, 128>}, {transform_indices = @transform_2, window_bounds = array<i64: 1, 1, 8, 128>}, {transform_indices = @transform_3, window_bounds = array<i64: 1, 8, 128>}, {transform_indices = @transform_4, window_bounds = array<i64: 1, 8, 128>}, {transform_indices = @transform_5, window_bounds = array<i64: 1, 8, 128>}]} {
    %c0_i32 = arith.constant 0 : i32
    %0 = arith.cmpi eq, %arg1, %c0_i32 : i32
    %1 = arith.extui %0 : i1 to i32
    %c0_i32_0 = arith.constant 0 : i32
    %2 = arith.cmpi ne, %1, %c0_i32_0 : i32
    scf.if %2 {
      %cst_90 = arith.constant 0.000000e+00 : f32
      %225 = vector.broadcast %cst_90 : f32 to vector<1x8x128xf32>
      %c0_91 = arith.constant 0 : index
      %c0_92 = arith.constant 0 : index
      %c0_93 = arith.constant 0 : index
      %226 = vector.load %arg5[%c0_91, %c0_92, %c0_93] : memref<1x8x128xf32, #tpu.memory_space<vmem>>, vector<1x8x128xf32>
      tpu.vector_store %arg5[%c0_91, %c0_92, %c0_93], %225 {strides = array<i32>} : memref<1x8x128xf32, #tpu.memory_space<vmem>>, vector<1x8x128xf32>,
      %cst_94 = arith.constant 0.000000e+00 : f32
      %227 = vector.broadcast %cst_94 : f32 to vector<1x8x128xf32>
      %c0_95 = arith.constant 0 : index
      %c0_96 = arith.constant 0 : index
      %c0_97 = arith.constant 0 : index
      %228 = vector.load %arg6[%c0_95, %c0_96, %c0_97] : memref<1x8x128xf32, #tpu.memory_space<vmem>>, vector<1x8x128xf32>
      tpu.vector_store %arg6[%c0_95, %c0_96, %c0_97], %227 {strides = array<i32>} : memref<1x8x128xf32, #tpu.memory_space<vmem>>, vector<1x8x128xf32>,
      %cst_98 = arith.constant 0.000000e+00 : f32
      %229 = vector.broadcast %cst_98 : f32 to vector<1x8x128xf32>
      %c0_99 = arith.constant 0 : index
      %c0_100 = arith.constant 0 : index
      %c0_101 = arith.constant 0 : index
      %230 = vector.load %arg7[%c0_99, %c0_100, %c0_101] : memref<1x8x128xf32, #tpu.memory_space<vmem>>, vector<1x8x128xf32>
      tpu.vector_store %arg7[%c0_99, %c0_100, %c0_101], %229 {strides = array<i32>} : memref<1x8x128xf32, #tpu.memory_space<vmem>>, vector<1x8x128xf32>,
    } else {
    }
    %c0 = arith.constant 0 : index
    %c0_1 = arith.constant 0 : index
    %c0_2 = arith.constant 0 : index
    %c0_3 = arith.constant 0 : index
    %3 = vector.load %arg2[%c0, %c0_1, %c0_2, %c0_3] : memref<1x4x8x128xf32, #tpu.memory_space<vmem>>, vector<1x4x8x128xf32>
    %c0_4 = arith.constant 0 : index
    %c0_5 = arith.constant 0 : index
    %c0_6 = arith.constant 0 : index
    %c0_7 = arith.constant 0 : index
    %4 = vector.load %arg3[%c0_4, %c0_5, %c0_6, %c0_7] : memref<1x1x8x128xi32, #tpu.memory_space<vmem>>, vector<1x1x8x128xi32>
    %5 = vector.shape_cast %4 : vector<1x1x8x128xi32> to vector<1x8x128xi32>
    %c0_8 = arith.constant 0 : index
    %c0_9 = arith.constant 0 : index
    %c0_10 = arith.constant 0 : index
    %c0_11 = arith.constant 0 : index
    %6 = vector.load %arg4[%c0_8, %c0_9, %c0_10, %c0_11] : memref<1x1x8x128xf32, #tpu.memory_space<vmem>>, vector<1x1x8x128xf32>
    %7 = vector.shape_cast %6 : vector<1x1x8x128xf32> to vector<1x8x128xf32>
    %8 = vector.extract_strided_slice %3 {offsets = [0, 0, 0, 0], sizes = [1, 1, 8, 128], strides = [1, 1, 1, 1]} : vector<1x4x8x128xf32> to vector<1x1x8x128xf32>
    %9 = vector.shape_cast %8 : vector<1x1x8x128xf32> to vector<1x8x128xf32>
    %c0_i32_12 = arith.constant 0 : i32
    %10 = vector.broadcast %c0_i32_12 : i32 to vector<1x8x128xi32>
    %11 = arith.cmpi eq, %5, %10 : vector<1x8x128xi32>
    %12 = arith.extui %11 : vector<1x8x128xi1> to vector<1x8x128xi32>
    %13 = arith.sitofp %12 : vector<1x8x128xi32> to vector<1x8x128xf32>
    %cst = arith.constant 0.899999976 : f32
    %14 = vector.broadcast %cst : f32 to vector<1x8x128xf32>
    %15 = arith.mulf %13, %14 : vector<1x8x128xf32>
    %cst_13 = arith.constant 2.500000e-02 : f32
    %16 = vector.broadcast %cst_13 : f32 to vector<1x8x128xf32>
    %17 = arith.addf %15, %16 : vector<1x8x128xf32>
    %cst_14 = arith.constant 0.000000e+00 : f32
    %18 = vector.broadcast %cst_14 : f32 to vector<1x8x128xf32>
    %19 = arith.maximumf %9, %18 : vector<1x8x128xf32>
    %20 = arith.mulf %9, %17 : vector<1x8x128xf32>
    %21 = arith.subf %19, %20 : vector<1x8x128xf32>
    %22 = math.absf %9 : vector<1x8x128xf32>
    %cst_15 = arith.constant 0.000000e+00 : f32
    %23 = vector.broadcast %cst_15 : f32 to vector<1x8x128xf32>
    %24 = arith.subf %23, %22 : vector<1x8x128xf32>
    %25 = math.exp %24 : vector<1x8x128xf32>
    %cst_16 = arith.constant 1.000000e+00 : f32
    %26 = vector.broadcast %cst_16 : f32 to vector<1x8x128xf32>
    %27 = arith.addf %26, %25 : vector<1x8x128xf32>
    %28 = math.log %27 : vector<1x8x128xf32>
    %29 = arith.addf %21, %28 : vector<1x8x128xf32>
    %cst_17 = arith.constant 0.000000e+00 : f32
    %30 = vector.broadcast %cst_17 : f32 to vector<1x8x128xf32>
    %31 = arith.subf %30, %29 : vector<1x8x128xf32>
    %32 = math.exp %31 : vector<1x8x128xf32>
    %cst_18 = arith.constant 1.000000e+00 : f32
    %33 = vector.broadcast %cst_18 : f32 to vector<1x8x128xf32>
    %34 = arith.subf %33, %32 : vector<1x8x128xf32>
    %35 = arith.mulf %34, %34 : vector<1x8x128xf32>
    %36 = arith.mulf %35, %29 : vector<1x8x128xf32>
    %cst_19 = arith.constant 0.000000e+00 : f32
    %37 = vector.broadcast %cst_19 : f32 to vector<1x8x128xf32>
    %38 = arith.subf %37, %9 : vector<1x8x128xf32>
    %39 = math.exp %38 : vector<1x8x128xf32>
    %cst_20 = arith.constant 1.000000e+00 : f32
    %40 = vector.broadcast %cst_20 : f32 to vector<1x8x128xf32>
    %41 = arith.addf %40, %39 : vector<1x8x128xf32>
    %cst_21 = arith.constant 1.000000e+00 : f32
    %42 = vector.broadcast %cst_21 : f32 to vector<1x8x128xf32>
    %43 = arith.divf %42, %41 : vector<1x8x128xf32>
    %44 = arith.addf %43, %13 : vector<1x8x128xf32>
    %cst_22 = arith.constant 9.99999974E-6 : f32
    %45 = vector.broadcast %cst_22 : f32 to vector<1x8x128xf32>
    %46 = arith.addf %44, %45 : vector<1x8x128xf32>
    %47 = tpu.reciprocal %46 {approx = true} : vector<1x8x128xf32> -> vector<1x8x128xf32>
    %cst_23 = arith.constant 2.000000e+00 : f32
    %48 = vector.broadcast %cst_23 : f32 to vector<1x8x128xf32>
    %49 = arith.mulf %48, %43 : vector<1x8x128xf32>
    %50 = arith.mulf %49, %13 : vector<1x8x128xf32>
    %cst_24 = arith.constant 9.99999974E-6 : f32
    %51 = vector.broadcast %cst_24 : f32 to vector<1x8x128xf32>
    %52 = arith.addf %50, %51 : vector<1x8x128xf32>
    %53 = arith.mulf %52, %47 : vector<1x8x128xf32>
    %cst_25 = arith.constant 1.000000e+00 : f32
    %54 = vector.broadcast %cst_25 : f32 to vector<1x8x128xf32>
    %55 = arith.subf %54, %53 : vector<1x8x128xf32>
    %cst_26 = arith.constant 2.000000e-01 : f32
    %56 = vector.broadcast %cst_26 : f32 to vector<1x8x128xf32>
    %57 = arith.mulf %55, %56 : vector<1x8x128xf32>
    %58 = vector.extract_strided_slice %3 {offsets = [0, 1, 0, 0], sizes = [1, 1, 8, 128], strides = [1, 1, 1, 1]} : vector<1x4x8x128xf32> to vector<1x1x8x128xf32>
    %59 = vector.shape_cast %58 : vector<1x1x8x128xf32> to vector<1x8x128xf32>
    %c1_i32 = arith.constant 1 : i32
    %60 = vector.broadcast %c1_i32 : i32 to vector<1x8x128xi32>
    %61 = arith.cmpi eq, %5, %60 : vector<1x8x128xi32>
    %62 = arith.extui %61 : vector<1x8x128xi1> to vector<1x8x128xi32>
    %63 = arith.sitofp %62 : vector<1x8x128xi32> to vector<1x8x128xf32>
    %cst_27 = arith.constant 0.899999976 : f32
    %64 = vector.broadcast %cst_27 : f32 to vector<1x8x128xf32>
    %65 = arith.mulf %63, %64 : vector<1x8x128xf32>
    %cst_28 = arith.constant 2.500000e-02 : f32
    %66 = vector.broadcast %cst_28 : f32 to vector<1x8x128xf32>
    %67 = arith.addf %65, %66 : vector<1x8x128xf32>
    %cst_29 = arith.constant 0.000000e+00 : f32
    %68 = vector.broadcast %cst_29 : f32 to vector<1x8x128xf32>
    %69 = arith.maximumf %59, %68 : vector<1x8x128xf32>
    %70 = arith.mulf %59, %67 : vector<1x8x128xf32>
    %71 = arith.subf %69, %70 : vector<1x8x128xf32>
    %72 = math.absf %59 : vector<1x8x128xf32>
    %cst_30 = arith.constant 0.000000e+00 : f32
    %73 = vector.broadcast %cst_30 : f32 to vector<1x8x128xf32>
    %74 = arith.subf %73, %72 : vector<1x8x128xf32>
    %75 = math.exp %74 : vector<1x8x128xf32>
    %cst_31 = arith.constant 1.000000e+00 : f32
    %76 = vector.broadcast %cst_31 : f32 to vector<1x8x128xf32>
    %77 = arith.addf %76, %75 : vector<1x8x128xf32>
    %78 = math.log %77 : vector<1x8x128xf32>
    %79 = arith.addf %71, %78 : vector<1x8x128xf32>
    %cst_32 = arith.constant 0.000000e+00 : f32
    %80 = vector.broadcast %cst_32 : f32 to vector<1x8x128xf32>
    %81 = arith.subf %80, %79 : vector<1x8x128xf32>
    %82 = math.exp %81 : vector<1x8x128xf32>
    %cst_33 = arith.constant 1.000000e+00 : f32
    %83 = vector.broadcast %cst_33 : f32 to vector<1x8x128xf32>
    %84 = arith.subf %83, %82 : vector<1x8x128xf32>
    %85 = arith.mulf %84, %84 : vector<1x8x128xf32>
    %86 = arith.mulf %85, %79 : vector<1x8x128xf32>
    %87 = arith.addf %36, %86 : vector<1x8x128xf32>
    %cst_34 = arith.constant 0.000000e+00 : f32
    %88 = vector.broadcast %cst_34 : f32 to vector<1x8x128xf32>
    %89 = arith.subf %88, %59 : vector<1x8x128xf32>
    %90 = math.exp %89 : vector<1x8x128xf32>
    %cst_35 = arith.constant 1.000000e+00 : f32
    %91 = vector.broadcast %cst_35 : f32 to vector<1x8x128xf32>
    %92 = arith.addf %91, %90 : vector<1x8x128xf32>
    %cst_36 = arith.constant 1.000000e+00 : f32
    %93 = vector.broadcast %cst_36 : f32 to vector<1x8x128xf32>
    %94 = arith.divf %93, %92 : vector<1x8x128xf32>
    %95 = arith.addf %94, %63 : vector<1x8x128xf32>
    %cst_37 = arith.constant 9.99999974E-6 : f32
    %96 = vector.broadcast %cst_37 : f32 to vector<1x8x128xf32>
    %97 = arith.addf %95, %96 : vector<1x8x128xf32>
    %98 = tpu.reciprocal %97 {approx = true} : vector<1x8x128xf32> -> vector<1x8x128xf32>
    %cst_38 = arith.constant 2.000000e+00 : f32
    %99 = vector.broadcast %cst_38 : f32 to vector<1x8x128xf32>
    %100 = arith.mulf %99, %94 : vector<1x8x128xf32>
    %101 = arith.mulf %100, %63 : vector<1x8x128xf32>
    %cst_39 = arith.constant 9.99999974E-6 : f32
    %102 = vector.broadcast %cst_39 : f32 to vector<1x8x128xf32>
    %103 = arith.addf %101, %102 : vector<1x8x128xf32>
    %104 = arith.mulf %103, %98 : vector<1x8x128xf32>
    %cst_40 = arith.constant 1.000000e+00 : f32
    %105 = vector.broadcast %cst_40 : f32 to vector<1x8x128xf32>
    %106 = arith.subf %105, %104 : vector<1x8x128xf32>
    %cst_41 = arith.constant 4.000000e-01 : f32
    %107 = vector.broadcast %cst_41 : f32 to vector<1x8x128xf32>
    %108 = arith.mulf %106, %107 : vector<1x8x128xf32>
    %109 = arith.addf %57, %108 : vector<1x8x128xf32>
    %110 = vector.extract_strided_slice %3 {offsets = [0, 2, 0, 0], sizes = [1, 1, 8, 128], strides = [1, 1, 1, 1]} : vector<1x4x8x128xf32> to vector<1x1x8x128xf32>
    %111 = vector.shape_cast %110 : vector<1x1x8x128xf32> to vector<1x8x128xf32>
    %c2_i32 = arith.constant 2 : i32
    %112 = vector.broadcast %c2_i32 : i32 to vector<1x8x128xi32>
    %113 = arith.cmpi eq, %5, %112 : vector<1x8x128xi32>
    %114 = arith.extui %113 : vector<1x8x128xi1> to vector<1x8x128xi32>
    %115 = arith.sitofp %114 : vector<1x8x128xi32> to vector<1x8x128xf32>
    %cst_42 = arith.constant 0.899999976 : f32
    %116 = vector.broadcast %cst_42 : f32 to vector<1x8x128xf32>
    %117 = arith.mulf %115, %116 : vector<1x8x128xf32>
    %cst_43 = arith.constant 2.500000e-02 : f32
    %118 = vector.broadcast %cst_43 : f32 to vector<1x8x128xf32>
    %119 = arith.addf %117, %118 : vector<1x8x128xf32>
    %cst_44 = arith.constant 0.000000e+00 : f32
    %120 = vector.broadcast %cst_44 : f32 to vector<1x8x128xf32>
    %121 = arith.maximumf %111, %120 : vector<1x8x128xf32>
    %122 = arith.mulf %111, %119 : vector<1x8x128xf32>
    %123 = arith.subf %121, %122 : vector<1x8x128xf32>
    %124 = math.absf %111 : vector<1x8x128xf32>
    %cst_45 = arith.constant 0.000000e+00 : f32
    %125 = vector.broadcast %cst_45 : f32 to vector<1x8x128xf32>
    %126 = arith.subf %125, %124 : vector<1x8x128xf32>
    %127 = math.exp %126 : vector<1x8x128xf32>
    %cst_46 = arith.constant 1.000000e+00 : f32
    %128 = vector.broadcast %cst_46 : f32 to vector<1x8x128xf32>
    %129 = arith.addf %128, %127 : vector<1x8x128xf32>
    %130 = math.log %129 : vector<1x8x128xf32>
    %131 = arith.addf %123, %130 : vector<1x8x128xf32>
    %cst_47 = arith.constant 0.000000e+00 : f32
    %132 = vector.broadcast %cst_47 : f32 to vector<1x8x128xf32>
    %133 = arith.subf %132, %131 : vector<1x8x128xf32>
    %134 = math.exp %133 : vector<1x8x128xf32>
    %cst_48 = arith.constant 1.000000e+00 : f32
    %135 = vector.broadcast %cst_48 : f32 to vector<1x8x128xf32>
    %136 = arith.subf %135, %134 : vector<1x8x128xf32>
    %137 = arith.mulf %136, %136 : vector<1x8x128xf32>
    %138 = arith.mulf %137, %131 : vector<1x8x128xf32>
    %139 = arith.addf %87, %138 : vector<1x8x128xf32>
    %cst_49 = arith.constant 0.000000e+00 : f32
    %140 = vector.broadcast %cst_49 : f32 to vector<1x8x128xf32>
    %141 = arith.subf %140, %111 : vector<1x8x128xf32>
    %142 = math.exp %141 : vector<1x8x128xf32>
    %cst_50 = arith.constant 1.000000e+00 : f32
    %143 = vector.broadcast %cst_50 : f32 to vector<1x8x128xf32>
    %144 = arith.addf %143, %142 : vector<1x8x128xf32>
    %cst_51 = arith.constant 1.000000e+00 : f32
    %145 = vector.broadcast %cst_51 : f32 to vector<1x8x128xf32>
    %146 = arith.divf %145, %144 : vector<1x8x128xf32>
    %147 = arith.addf %146, %115 : vector<1x8x128xf32>
    %cst_52 = arith.constant 9.99999974E-6 : f32
    %148 = vector.broadcast %cst_52 : f32 to vector<1x8x128xf32>
    %149 = arith.addf %147, %148 : vector<1x8x128xf32>
    %150 = tpu.reciprocal %149 {approx = true} : vector<1x8x128xf32> -> vector<1x8x128xf32>
    %cst_53 = arith.constant 2.000000e+00 : f32
    %151 = vector.broadcast %cst_53 : f32 to vector<1x8x128xf32>
    %152 = arith.mulf %151, %146 : vector<1x8x128xf32>
    %153 = arith.mulf %152, %115 : vector<1x8x128xf32>
    %cst_54 = arith.constant 9.99999974E-6 : f32
    %154 = vector.broadcast %cst_54 : f32 to vector<1x8x128xf32>
    %155 = arith.addf %153, %154 : vector<1x8x128xf32>
    %156 = arith.mulf %155, %150 : vector<1x8x128xf32>
    %cst_55 = arith.constant 1.000000e+00 : f32
    %157 = vector.broadcast %cst_55 : f32 to vector<1x8x128xf32>
    %158 = arith.subf %157, %156 : vector<1x8x128xf32>
    %cst_56 = arith.constant 1.000000e-01 : f32
    %159 = vector.broadcast %cst_56 : f32 to vector<1x8x128xf32>
    %160 = arith.mulf %158, %159 : vector<1x8x128xf32>
    %161 = arith.addf %109, %160 : vector<1x8x128xf32>
    %162 = vector.extract_strided_slice %3 {offsets = [0, 3, 0, 0], sizes = [1, 1, 8, 128], strides = [1, 1, 1, 1]} : vector<1x4x8x128xf32> to vector<1x1x8x128xf32>
    %163 = vector.shape_cast %162 : vector<1x1x8x128xf32> to vector<1x8x128xf32>
    %c3_i32 = arith.constant 3 : i32
    %164 = vector.broadcast %c3_i32 : i32 to vector<1x8x128xi32>
    %165 = arith.cmpi eq, %5, %164 : vector<1x8x128xi32>
    %166 = arith.extui %165 : vector<1x8x128xi1> to vector<1x8x128xi32>
    %167 = arith.sitofp %166 : vector<1x8x128xi32> to vector<1x8x128xf32>
    %cst_57 = arith.constant 0.899999976 : f32
    %168 = vector.broadcast %cst_57 : f32 to vector<1x8x128xf32>
    %169 = arith.mulf %167, %168 : vector<1x8x128xf32>
    %cst_58 = arith.constant 2.500000e-02 : f32
    %170 = vector.broadcast %cst_58 : f32 to vector<1x8x128xf32>
    %171 = arith.addf %169, %170 : vector<1x8x128xf32>
    %cst_59 = arith.constant 0.000000e+00 : f32
    %172 = vector.broadcast %cst_59 : f32 to vector<1x8x128xf32>
    %173 = arith.maximumf %163, %172 : vector<1x8x128xf32>
    %174 = arith.mulf %163, %171 : vector<1x8x128xf32>
    %175 = arith.subf %173, %174 : vector<1x8x128xf32>
    %176 = math.absf %163 : vector<1x8x128xf32>
    %cst_60 = arith.constant 0.000000e+00 : f32
    %177 = vector.broadcast %cst_60 : f32 to vector<1x8x128xf32>
    %178 = arith.subf %177, %176 : vector<1x8x128xf32>
    %179 = math.exp %178 : vector<1x8x128xf32>
    %cst_61 = arith.constant 1.000000e+00 : f32
    %180 = vector.broadcast %cst_61 : f32 to vector<1x8x128xf32>
    %181 = arith.addf %180, %179 : vector<1x8x128xf32>
    %182 = math.log %181 : vector<1x8x128xf32>
    %183 = arith.addf %175, %182 : vector<1x8x128xf32>
    %cst_62 = arith.constant 0.000000e+00 : f32
    %184 = vector.broadcast %cst_62 : f32 to vector<1x8x128xf32>
    %185 = arith.subf %184, %183 : vector<1x8x128xf32>
    %186 = math.exp %185 : vector<1x8x128xf32>
    %cst_63 = arith.constant 1.000000e+00 : f32
    %187 = vector.broadcast %cst_63 : f32 to vector<1x8x128xf32>
    %188 = arith.subf %187, %186 : vector<1x8x128xf32>
    %189 = arith.mulf %188, %188 : vector<1x8x128xf32>
    %190 = arith.mulf %189, %183 : vector<1x8x128xf32>
    %191 = arith.addf %139, %190 : vector<1x8x128xf32>
    %cst_64 = arith.constant 0.000000e+00 : f32
    %192 = vector.broadcast %cst_64 : f32 to vector<1x8x128xf32>
    %193 = arith.subf %192, %163 : vector<1x8x128xf32>
    %194 = math.exp %193 : vector<1x8x128xf32>
    %cst_65 = arith.constant 1.000000e+00 : f32
    %195 = vector.broadcast %cst_65 : f32 to vector<1x8x128xf32>
    %196 = arith.addf %195, %194 : vector<1x8x128xf32>
    %cst_66 = arith.constant 1.000000e+00 : f32
    %197 = vector.broadcast %cst_66 : f32 to vector<1x8x128xf32>
    %198 = arith.divf %197, %196 : vector<1x8x128xf32>
    %199 = arith.addf %198, %167 : vector<1x8x128xf32>
    %cst_67 = arith.constant 9.99999974E-6 : f32
    %200 = vector.broadcast %cst_67 : f32 to vector<1x8x128xf32>
    %201 = arith.addf %199, %200 : vector<1x8x128xf32>
    %202 = tpu.reciprocal %201 {approx = true} : vector<1x8x128xf32> -> vector<1x8x128xf32>
    %cst_68 = arith.constant 2.000000e+00 : f32
    %203 = vector.broadcast %cst_68 : f32 to vector<1x8x128xf32>
    %204 = arith.mulf %203, %198 : vector<1x8x128xf32>
    %205 = arith.mulf %204, %167 : vector<1x8x128xf32>
    %cst_69 = arith.constant 9.99999974E-6 : f32
    %206 = vector.broadcast %cst_69 : f32 to vector<1x8x128xf32>
    %207 = arith.addf %205, %206 : vector<1x8x128xf32>
    %208 = arith.mulf %207, %202 : vector<1x8x128xf32>
    %cst_70 = arith.constant 1.000000e+00 : f32
    %209 = vector.broadcast %cst_70 : f32 to vector<1x8x128xf32>
    %210 = arith.subf %209, %208 : vector<1x8x128xf32>
    %cst_71 = arith.constant 3.000000e-01 : f32
    %211 = vector.broadcast %cst_71 : f32 to vector<1x8x128xf32>
    %212 = arith.mulf %210, %211 : vector<1x8x128xf32>
    %213 = arith.addf %161, %212 : vector<1x8x128xf32>
    %c0_72 = arith.constant 0 : index
    %c0_73 = arith.constant 0 : index
    %c0_74 = arith.constant 0 : index
    %214 = vector.load %arg5[%c0_72, %c0_73, %c0_74] : memref<1x8x128xf32, #tpu.memory_space<vmem>>, vector<1x8x128xf32>
    %215 = arith.mulf %191, %7 : vector<1x8x128xf32>
    %216 = arith.addf %214, %215 : vector<1x8x128xf32>
    %c0_75 = arith.constant 0 : index
    %c0_76 = arith.constant 0 : index
    %c0_77 = arith.constant 0 : index
    %217 = vector.load %arg5[%c0_75, %c0_76, %c0_77] : memref<1x8x128xf32, #tpu.memory_space<vmem>>, vector<1x8x128xf32>
    tpu.vector_store %arg5[%c0_75, %c0_76, %c0_77], %216 {strides = array<i32>} : memref<1x8x128xf32, #tpu.memory_space<vmem>>, vector<1x8x128xf32>,
    %c0_78 = arith.constant 0 : index
    %c0_79 = arith.constant 0 : index
    %c0_80 = arith.constant 0 : index
    %218 = vector.load %arg6[%c0_78, %c0_79, %c0_80] : memref<1x8x128xf32, #tpu.memory_space<vmem>>, vector<1x8x128xf32>
    %219 = arith.mulf %213, %7 : vector<1x8x128xf32>
    %220 = arith.addf %218, %219 : vector<1x8x128xf32>
    %c0_81 = arith.constant 0 : index
    %c0_82 = arith.constant 0 : index
    %c0_83 = arith.constant 0 : index
    %221 = vector.load %arg6[%c0_81, %c0_82, %c0_83] : memref<1x8x128xf32, #tpu.memory_space<vmem>>, vector<1x8x128xf32>
    tpu.vector_store %arg6[%c0_81, %c0_82, %c0_83], %220 {strides = array<i32>} : memref<1x8x128xf32, #tpu.memory_space<vmem>>, vector<1x8x128xf32>,
    %c0_84 = arith.constant 0 : index
    %c0_85 = arith.constant 0 : index
    %c0_86 = arith.constant 0 : index
    %222 = vector.load %arg7[%c0_84, %c0_85, %c0_86] : memref<1x8x128xf32, #tpu.memory_space<vmem>>, vector<1x8x128xf32>
    %223 = arith.addf %222, %7 : vector<1x8x128xf32>
    %c0_87 = arith.constant 0 : index
    %c0_88 = arith.constant 0 : index
    %c0_89 = arith.constant 0 : index
    %224 = vector.load %arg7[%c0_87, %c0_88, %c0_89] : memref<1x8x128xf32, #tpu.memory_space<vmem>>, vector<1x8x128xf32>
    tpu.vector_store %arg7[%c0_87, %c0_88, %c0_89], %223 {strides = array<i32>} : memref<1x8x128xf32, #tpu.memory_space<vmem>>, vector<1x8x128xf32>,
    return
  }
  func.func @transform_0(%arg0: i32, %arg1: i32) -> (i32, i32, i32, i32) {
    %c0_i32 = arith.constant 0 : i32
    %c0_i32_0 = arith.constant 0 : i32
    %c0_i32_1 = arith.constant 0 : i32
    return %arg0, %c0_i32, %arg1, %c0_i32_0 : i32, i32, i32, i32
  }
  func.func @transform_1(%arg0: i32, %arg1: i32) -> (i32, i32, i32, i32) {
    %c0_i32 = arith.constant 0 : i32
    %c0_i32_0 = arith.constant 0 : i32
    %c0_i32_1 = arith.constant 0 : i32
    return %arg0, %c0_i32, %arg1, %c0_i32_0 : i32, i32, i32, i32
  }
  func.func @transform_2(%arg0: i32, %arg1: i32) -> (i32, i32, i32, i32) {
    %c0_i32 = arith.constant 0 : i32
    %c0_i32_0 = arith.constant 0 : i32
    %c0_i32_1 = arith.constant 0 : i32
    return %arg0, %c0_i32, %arg1, %c0_i32_0 : i32, i32, i32, i32
  }
  func.func @transform_3(%arg0: i32, %arg1: i32) -> (i32, i32, i32) {
    %c0_i32 = arith.constant 0 : i32
    %c0_i32_0 = arith.constant 0 : i32
    %c0_i32_1 = arith.constant 0 : i32
    return %arg0, %c0_i32, %c0_i32_0 : i32, i32, i32
  }
  func.func @transform_4(%arg0: i32, %arg1: i32) -> (i32, i32, i32) {
    %c0_i32 = arith.constant 0 : i32
    %c0_i32_0 = arith.constant 0 : i32
    %c0_i32_1 = arith.constant 0 : i32
    return %arg0, %c0_i32, %c0_i32_0 : i32, i32, i32
  }
  func.func @transform_5(%arg0: i32, %arg1: i32) -> (i32, i32, i32) {
    %c0_i32 = arith.constant 0 : i32
    %c0_i32_0 = arith.constant 0 : i32
    %c0_i32_1 = arith.constant 0 : i32
    return %arg0, %c0_i32, %c0_i32_0 : i32, i32, i32
  }
}

</mosaic_0001>

<llo_original>
// kernel: tpu_custom_call.1
$region0: #{tpu_custom_call.1}
  #allocation0 [shape = 'u32[]', space=smem, size = 0x4, offset = 0x4, fixed_abs, tag = 'smem constant byte address 0x4 - core index']
  #allocation1 [shape = 'u32[144,128]{1,0:T(1,128)}', space=vmem, size = 0x12000, scoped, tag = 'internal scratch']
  %s0 = inlined_call_operand.hbm [shape: f32[2,4,8,128], index: 0, kind: input, shape index: {}]
  %s1 = inlined_call_operand.hbm [shape: s32[2,1,8,128], index: 1, kind: input, shape index: {}]
  %s2 = inlined_call_operand.hbm [shape: f32[2,1,8,128], index: 2, kind: input, shape index: {}]
  %s3 = inlined_call_operand.hbm [shape: f32[2,8,128], index: 3, kind: output, shape index: {0}]
  %s4 = inlined_call_operand.hbm [shape: f32[2,8,128], index: 4, kind: output, shape index: {1}]
  %s5 = inlined_call_operand.hbm [shape: f32[2,8,128], index: 5, kind: output, shape index: {2}]
  %6 = xla_tuple %s3, %s4, %s5
  %s7 = sld [smem:[#allocation0]]
  $region77: #{tpu_custom_call.1} parent=0
    _
  %s9 = ssub.s32 1, %s7
  %s10 = scalar_select 0, %s9, %s7
  $region1: #{tpu_custom_call.1} parent=0
    #allocation2 [shape = 'u8[32768]{0}', space=vmem, size = 0x8000, scoped, tag = 'input window, operand 0']
    #allocation3 [shape = 's32[2]{0}', space=sflag, size = 0x8, scoped, tag = 'scoped memory for tpu_custom_call.1']
    #allocation4 [shape = 's32[2]{0}', space=sflag, size = 0x8, scoped, tag = 'scoped memory for tpu_custom_call.1']
    #allocation5 [shape = 'u8[8192]{0}', space=vmem, size = 0x2000, scoped, tag = 'input window, operand 1']
    #allocation6 [shape = 's32[2]{0}', space=sflag, size = 0x8, scoped, tag = 'scoped memory for tpu_custom_call.1']
    #allocation7 [shape = 'u8[8192]{0}', space=vmem, size = 0x2000, scoped, tag = 'input window, operand 2']
    #allocation8 [shape = 'u8[8192]{0}', space=vmem, size = 0x2000, scoped, tag = 'output window, operand 0']
    #allocation9 [shape = 'u8[8192]{0}', space=vmem, size = 0x2000, scoped, tag = 'output window, operand 1']
    #allocation10 [shape = 's32[2]{0}', space=sflag, size = 0x8, scoped, tag = 'scoped memory for tpu_custom_call.1']
    #allocation11 [shape = 'u8[8192]{0}', space=vmem, size = 0x2000, scoped, tag = 'output window, operand 2']
    %11 = vsyncpa [#allocation3], 0
    %s12 = scalar_lea.sflag [#allocation3], 1
    %13 = vsyncpa %s12, 0
    %14 = vsyncpa [#allocation6], 0
    %s15 = scalar_lea.sflag [#allocation6], 1
    %16 = vsyncpa %s15, 0
    %17 = vsyncpa [#allocation4], 0
    %s18 = scalar_lea.sflag [#allocation4], 1
    %19 = vsyncpa %s18, 0
    %20 = vsyncpa [#allocation10], 0
    %s21 = scalar_lea.sflag [#allocation10], 1
    %22 = vsyncpa %s21, 0
    loop: start=0, step=1, limit=4
    $region2: #{tpu_custom_call.1} parent=1 // loop_pre_header
      _
    $region3: #{tpu_custom_call.1} parent=1 // loop_header
      %s24 = sphi 0, %s28
      %p25 = scmp.ge.s32.totalorder %s24, 4
      %s31 = sphi 0, %s43
      %s32 = sphi 0, %s39
      %s33 = sphi 0, %s31
      %s34 = sphi 0, %s32
      %s35 = sphi 0, %s33
      %s36 = sphi 0, %s34
      %s48 = sphi 0, %s50
      %s51 = sphi 0, %s48
      %s52 = sphi 0, %s51
      %s68 = sphi 0, %s52
      %s76 = sphi 0, %s78
      %s79 = sphi 0, %s76
      %s80 = sphi 0, %s79
      %s96 = sphi 0, %s80
      %s104 = sphi 0, %s106
      %s107 = sphi 0, %s104
      %s108 = sphi 0, %s107
      %s124 = sphi 0, %s108
      %s130 = sphi 0, %s132
      %s133 = sphi 0, %s130
      %s134 = sphi 0, %s133
      %s150 = sphi 0, %s134
      %s156 = sphi 0, %s158
      %s159 = sphi 0, %s156
      %s160 = sphi 0, %s159
      %s176 = sphi 0, %s160
      %s182 = sphi 0, %s184
      %s185 = sphi 0, %s182
      %s186 = sphi 0, %s185
      %s202 = sphi 0, %s186
    $region4: #{tpu_custom_call.1} parent=1 // loop_header_branch
      %27 = sbr.rel (%p25) target = $region8
    $region5: #{tpu_custom_call.1} parent=1 // loop_body
      %s29 = ssub.s32 %s24, 1
      %s30 = ssub.s32 %s24, 2
      %s37 = sadd.s32 1, %s32
      %p38 = scmp.ge.s32.totalorder %s37, 1
      %s39 = scalar_select %p38, 0, %s37
      %s40 = sadd.s32 1, %s31
      %s41 = scalar_select %p38, %s40, %s31
      %p42 = scmp.ge.s32.totalorder %s41, 2
      %s43 = scalar_select %p42, 0, %s41
      %s44 = ssub.s32 %s31, %s43
      %s45 = ssub.s32 %s32, %s39
      %s46 = sor.u32 %s44, %s45
      %p47 = scmp.eq.s32.totalorder %s46, 0
      %s49 = sadd.s32 %s48, 1
      %s50 = scalar_select %p47, %s48, %s49
      %p53 = pneg %p47
      %p54 = scmp.eq.s32.totalorder %s24, 1
      %p55 = por %p53, %p54
      %p56 = scmp.ne.s32.totalorder %s48, %s51
      %p57 = scmp.eq.s32.totalorder %s24, 0
      %p58 = por %p56, %p57
      %p59 = scmp.ne.s32.totalorder %s48, %s51
      %p60 = scmp.eq.s32.totalorder %s29, 1
      %p61 = por %p59, %p60
      %p62 = scmp.ne.s32.totalorder %s51, %s52
      %p63 = scmp.eq.s32.totalorder %s29, 0
      %p64 = por %p62, %p63
      %p65 = scmp.ne.s32.totalorder %s51, %s52
      %p66 = scmp.eq.s32.totalorder %s30, 1
      %p67 = por %p65, %p66
      %p69 = scmp.ne.s32.totalorder %s52, %s68
      %p70 = scmp.eq.s32.totalorder %s30, 0
      %p71 = por %p69, %p70
      %s72 = ssub.s32 %s31, %s43
      %s73 = ssub.s32 %s32, %s39
      %s74 = sor.u32 %s72, %s73
      %p75 = scmp.eq.s32.totalorder %s74, 0
      %s77 = sadd.s32 %s76, 1
      %s78 = scalar_select %p75, %s76, %s77
      %p81 = pneg %p75
      %p82 = scmp.eq.s32.totalorder %s24, 1
      %p83 = por %p81, %p82
      %p84 = scmp.ne.s32.totalorder %s76, %s79
      %p85 = scmp.eq.s32.totalorder %s24, 0
      %p86 = por %p84, %p85
      %p87 = scmp.ne.s32.totalorder %s76, %s79
      %p88 = scmp.eq.s32.totalorder %s29, 1
      %p89 = por %p87, %p88
      %p90 = scmp.ne.s32.totalorder %s79, %s80
      %p91 = scmp.eq.s32.totalorder %s29, 0
      %p92 = por %p90, %p91
      %p93 = scmp.ne.s32.totalorder %s79, %s80
      %p94 = scmp.eq.s32.totalorder %s30, 1
      %p95 = por %p93, %p94
      %p97 = scmp.ne.s32.totalorder %s80, %s96
      %p98 = scmp.eq.s32.totalorder %s30, 0
      %p99 = por %p97, %p98
      %s100 = ssub.s32 %s31, %s43
      %s101 = ssub.s32 %s32, %s39
      %s102 = sor.u32 %s100, %s101
      %p103 = scmp.eq.s32.totalorder %s102, 0
      %s105 = sadd.s32 %s104, 1
      %s106 = scalar_select %p103, %s104, %s105
      %p109 = pneg %p103
      %p110 = scmp.eq.s32.totalorder %s24, 1
      %p111 = por %p109, %p110
      %p112 = scmp.ne.s32.totalorder %s104, %s107
      %p113 = scmp.eq.s32.totalorder %s24, 0
      %p114 = por %p112, %p113
      %p115 = scmp.ne.s32.totalorder %s104, %s107
      %p116 = scmp.eq.s32.totalorder %s29, 1
      %p117 = por %p115, %p116
      %p118 = scmp.ne.s32.totalorder %s107, %s108
      %p119 = scmp.eq.s32.totalorder %s29, 0
      %p120 = por %p118, %p119
      %p121 = scmp.ne.s32.totalorder %s107, %s108
      %p122 = scmp.eq.s32.totalorder %s30, 1
      %p123 = por %p121, %p122
      %p125 = scmp.ne.s32.totalorder %s108, %s124
      %p126 = scmp.eq.s32.totalorder %s30, 0
      %p127 = por %p125, %p126
      %s128 = ssub.s32 %s31, %s43
      %p129 = scmp.eq.s32.totalorder %s128, 0
      %s131 = sadd.s32 %s130, 1
      %s132 = scalar_select %p129, %s130, %s131
      %p135 = pneg %p129
      %p136 = scmp.eq.s32.totalorder %s24, 1
      %p137 = por %p135, %p136
      %p138 = scmp.ne.s32.totalorder %s130, %s133
      %p139 = scmp.eq.s32.totalorder %s24, 0
      %p140 = por %p138, %p139
      %p141 = scmp.ne.s32.totalorder %s130, %s133
      %p142 = scmp.eq.s32.totalorder %s29, 1
      %p143 = por %p141, %p142
      %p144 = scmp.ne.s32.totalorder %s133, %s134
      %p145 = scmp.eq.s32.totalorder %s29, 0
      %p146 = por %p144, %p145
      %p147 = scmp.ne.s32.totalorder %s133, %s134
      %p148 = scmp.eq.s32.totalorder %s30, 1
      %p149 = por %p147, %p148
      %p151 = scmp.ne.s32.totalorder %s134, %s150
      %p152 = scmp.eq.s32.totalorder %s30, 0
      %p153 = por %p151, %p152
      %s154 = ssub.s32 %s31, %s43
      %p155 = scmp.eq.s32.totalorder %s154, 0
      %s157 = sadd.s32 %s156, 1
      %s158 = scalar_select %p155, %s156, %s157
      %p161 = pneg %p155
      %p162 = scmp.eq.s32.totalorder %s24, 1
      %p163 = por %p161, %p162
      %p164 = scmp.ne.s32.totalorder %s156, %s159
      %p165 = scmp.eq.s32.totalorder %s24, 0
      %p166 = por %p164, %p165
      %p167 = scmp.ne.s32.totalorder %s156, %s159
      %p168 = scmp.eq.s32.totalorder %s29, 1
      %p169 = por %p167, %p168
      %p170 = scmp.ne.s32.totalorder %s159, %s160
      %p171 = scmp.eq.s32.totalorder %s29, 0
      %p172 = por %p170, %p171
      %p173 = scmp.ne.s32.totalorder %s159, %s160
      %p174 = scmp.eq.s32.totalorder %s30, 1
      %p175 = por %p173, %p174
      %p177 = scmp.ne.s32.totalorder %s160, %s176
      %p178 = scmp.eq.s32.totalorder %s30, 0
      %p179 = por %p177, %p178
      %s180 = ssub.s32 %s31, %s43
      %p181 = scmp.eq.s32.totalorder %s180, 0
      %s183 = sadd.s32 %s182, 1
      %s184 = scalar_select %p181, %s182, %s183
      %p187 = pneg %p181
      %p188 = scmp.eq.s32.totalorder %s24, 1
      %p189 = por %p187, %p188
      %p190 = scmp.ne.s32.totalorder %s182, %s185
      %p191 = scmp.eq.s32.totalorder %s24, 0
      %p192 = por %p190, %p191
      %p193 = scmp.ne.s32.totalorder %s182, %s185
      %p194 = scmp.eq.s32.totalorder %s29, 1
      %p195 = por %p193, %p194
      %p196 = scmp.ne.s32.totalorder %s185, %s186
      %p197 = scmp.eq.s32.totalorder %s29, 0
      %p198 = por %p196, %p197
      %p199 = scmp.ne.s32.totalorder %s185, %s186
      %p200 = scmp.eq.s32.totalorder %s30, 1
      %p201 = por %p199, %p200
      %p203 = scmp.ne.s32.totalorder %s186, %s202
      %p204 = scmp.eq.s32.totalorder %s30, 0
      %p205 = por %p203, %p204
      %p206 = scmp.le.s32.totalorder 1, %s24
      %p207 = scmp.lt.s32.totalorder %s24, 3
      %p208 = pnand %p206, %p207
      %p209 = pneg %p208
      // Predicated region
      $region9: #{tpu_custom_call.1} parent=5 // pred_check
        _
      $region10: #{tpu_custom_call.1} parent=5 // pred_check_branch
        %211 = sbr.rel (%p208) target = $region12
      $region11: #{tpu_custom_call.1} parent=5 // pred_region
        %s212 = ssub.s32 %s24, 1
      $region12: #{tpu_custom_call.1} parent=5 // pred_fallthru
        _
      %p213 = scmp.lt.s32.totalorder %s24, 2
      // Predicated region
      $region13: #{tpu_custom_call.1} parent=5 // pred_check
        %p214 = pneg %p213
      $region14: #{tpu_custom_call.1} parent=5 // pred_check_branch
        %216 = sbr.rel (%p214) target = $region16
      $region15: #{tpu_custom_call.1} parent=5 // pred_region
        // Predicated region
        $region17: #{tpu_custom_call.1} parent=15 // pred_check
          %p217 = pneg %p58
        $region18: #{tpu_custom_call.1} parent=15 // pred_check_branch
          %219 = sbr.rel (%p217) target = $region20
        $region19: #{tpu_custom_call.1} parent=15 // pred_region
          %s220 = sand.u32 %s48, 1
          %s221 = scalar_lea.sflag [#allocation3], %s220
          %s222 = sand.u32 %s48, 1
          %s223 = smul.addr %s222, 32
          %s224 = scalar_lea.vmem [#allocation2], %s223
          %s226 = ssub.s32 512, 512
          %227 = vsyncadd %s221, %s226
          %s228 = smul.addr %s31, 4
          %s229 = sadd.s32 %s32, %s228
          %s230 = smul.addr %s229, 128
          %s231 = scalar_lea.hbm %s0, %s230
          %s232 = sshll.u32 %s224, 4
          %s233 = int_to_ptr.vmem [resolvable:$true] %s232
          %238 = dma.hbm_to_vmem [thread:$0]  %s231, 512, %s233, %s221, 128, 128, 8
        $region20: #{tpu_custom_call.1} parent=15 // pred_fallthru
          _
        // Predicated region
        $region21: #{tpu_custom_call.1} parent=15 // pred_check
          %p239 = pneg %p86
        $region22: #{tpu_custom_call.1} parent=15 // pred_check_branch
          %241 = sbr.rel (%p239) target = $region24
        $region23: #{tpu_custom_call.1} parent=15 // pred_region
          %s242 = sand.u32 %s24, 1
          %s243 = scalar_lea.sflag [#allocation6], %s242
          %s244 = sand.u32 %s76, 1
          %s245 = smul.addr %s244, 8
          %s246 = scalar_lea.vmem [#allocation5], %s245
          %s248 = ssub.s32 128, 128
          %249 = vsyncadd %s243, %s248
          %s250 = sadd.s32 %s32, %s31
          %s251 = smul.addr %s250, 128
          %s252 = scalar_lea.hbm %s1, %s251
          %s254 = sshll.u32 %s246, 4
          %s255 = int_to_ptr.vmem [resolvable:$true] %s254
          %257 = dma.hbm_to_vmem [thread:$0]  %s252, 128, %s255, %s243
        $region24: #{tpu_custom_call.1} parent=15 // pred_fallthru
          _
        // Predicated region
        $region25: #{tpu_custom_call.1} parent=15 // pred_check
          %p258 = pneg %p114
        $region26: #{tpu_custom_call.1} parent=15 // pred_check_branch
          %260 = sbr.rel (%p258) target = $region28
        $region27: #{tpu_custom_call.1} parent=15 // pred_region
          %s261 = sand.u32 %s24, 1
          %s262 = scalar_lea.sflag [#allocation6], %s261
          %s263 = sand.u32 %s104, 1
          %s264 = smul.addr %s263, 8
          %s265 = scalar_lea.vmem [#allocation7], %s264
          %s267 = ssub.s32 128, 128
          %268 = vsyncadd %s262, %s267
          %s269 = sadd.s32 %s32, %s31
          %s270 = smul.addr %s269, 128
          %s271 = scalar_lea.hbm %s2, %s270
          %s273 = sshll.u32 %s265, 4
          %s274 = int_to_ptr.vmem [resolvable:$true] %s273
          %276 = dma.hbm_to_vmem [thread:$0]  %s271, 128, %s274, %s262
        $region28: #{tpu_custom_call.1} parent=15 // pred_fallthru
          _
      $region16: #{tpu_custom_call.1} parent=5 // pred_fallthru
        _
      %p277 = scmp.le.s32.totalorder 1, %s24
      %p278 = scmp.lt.s32.totalorder %s24, 3
      %p279 = pnand %p277, %p278
      %p280 = pneg %p279
      // Predicated region
      $region29: #{tpu_custom_call.1} parent=5 // pred_check
        _
      $region30: #{tpu_custom_call.1} parent=5 // pred_check_branch
        %282 = sbr.rel (%p279) target = $region32
      $region31: #{tpu_custom_call.1} parent=5 // pred_region
        %s283 = ssub.s32 %s24, 1
        %s284 = sand.u32 %s51, 1
        %s285 = scalar_lea.sflag [#allocation3], %s284
        %s286 = sand.u32 %s51, 1
        %s287 = smul.addr %s286, 32
        %s288 = scalar_lea.vmem [#allocation2], %s287
        // Predicated region
        $region33: #{tpu_custom_call.1} parent=31 // pred_check
          %p289 = pneg %p64
        $region34: #{tpu_custom_call.1} parent=31 // pred_check_branch
          %291 = sbr.rel (%p289) target = $region36
        $region35: #{tpu_custom_call.1} parent=31 // pred_region
          %292 = dma.done %s285, 512
        $region36: #{tpu_custom_call.1} parent=31 // pred_fallthru
          _
        %s293 = sand.u32 %s29, 1
        %s294 = scalar_lea.sflag [#allocation6], %s293
        %s295 = sand.u32 %s79, 1
        %s296 = smul.addr %s295, 8
        %s297 = scalar_lea.vmem [#allocation5], %s296
        // Predicated region
        $region37: #{tpu_custom_call.1} parent=31 // pred_check
          %p298 = pneg %p92
        $region38: #{tpu_custom_call.1} parent=31 // pred_check_branch
          %300 = sbr.rel (%p298) target = $region40
        $region39: #{tpu_custom_call.1} parent=31 // pred_region
          %301 = dma.done %s294, 128
        $region40: #{tpu_custom_call.1} parent=31 // pred_fallthru
          _
        %s302 = sand.u32 %s29, 1
        %s303 = scalar_lea.sflag [#allocation6], %s302
        %s304 = sand.u32 %s107, 1
        %s305 = smul.addr %s304, 8
        %s306 = scalar_lea.vmem [#allocation7], %s305
        // Predicated region
        $region41: #{tpu_custom_call.1} parent=31 // pred_check
          %p307 = pneg %p120
        $region42: #{tpu_custom_call.1} parent=31 // pred_check_branch
          %309 = sbr.rel (%p307) target = $region44
        $region43: #{tpu_custom_call.1} parent=31 // pred_region
          %310 = dma.done %s303, 128
        $region44: #{tpu_custom_call.1} parent=31 // pred_fallthru
          _
        %s311 = sand.u32 %s51, 1
        %s312 = scalar_lea.sflag [#allocation3], %s311
        %s313 = sand.u32 %s51, 1
        %s314 = smul.addr %s313, 32
        %s315 = scalar_lea.vmem [#allocation2], %s314
        %p316 = pneg %p64
        %p317 = pneg %p61
        %s318 = sand.u32 %s29, 1
        %s319 = scalar_lea.sflag [#allocation6], %s318
        %s320 = sand.u32 %s79, 1
        %s321 = smul.addr %s320, 8
        %s322 = scalar_lea.vmem [#allocation5], %s321
        %p323 = pneg %p92
        %p324 = pneg %p89
        %s325 = sand.u32 %s29, 1
        %s326 = scalar_lea.sflag [#allocation6], %s325
        %s327 = sand.u32 %s107, 1
        %s328 = smul.addr %s327, 8
        %s329 = scalar_lea.vmem [#allocation7], %s328
        %p330 = pneg %p120
        %p331 = pneg %p117
        %p332 = pneg %p146
        %p333 = pneg %p143
        %s334 = sand.u32 %s133, 1
        %s335 = scalar_lea.sflag [#allocation4], %s334
        %s336 = sand.u32 %s133, 1
        %s337 = smul.addr %s336, 8
        %s338 = scalar_lea.vmem [#allocation8], %s337
        %p339 = pneg %p172
        %p340 = pneg %p169
        %s341 = sand.u32 %s29, 1
        %s342 = scalar_lea.sflag [#allocation10], %s341
        %s343 = sand.u32 %s159, 1
        %s344 = smul.addr %s343, 8
        %s345 = scalar_lea.vmem [#allocation9], %s344
        %p346 = pneg %p198
        %p347 = pneg %p195
        %s348 = sand.u32 %s29, 1
        %s349 = scalar_lea.sflag [#allocation10], %s348
        %s350 = sand.u32 %s185, 1
        %s351 = smul.addr %s350, 8
        %s352 = scalar_lea.vmem [#allocation11], %s351
        %p353 = scmp.eq.s32.totalorder %s34, 0
        // Predicated region
        $region45: #{tpu_custom_call.1} parent=31 // pred_check
          %p354 = pneg %p353
        $region46: #{tpu_custom_call.1} parent=31 // pred_check_branch
          %356 = sbr.rel (%p354) target = $region48
        $region47: #{tpu_custom_call.1} parent=31 // pred_region
          %357 = vst [vmem:[%s338] sm:$0xff] 0.0
          %358 = vst [vmem:[%s345] sm:$0xff] 0.0
          %359 = vst [vmem:[%s352] sm:$0xff] 0.0
        $region48: #{tpu_custom_call.1} parent=31 // pred_fallthru
          _
        %v360 = vld [vmem:[%s288] sm:$0xff]
        %v361 = vld [vmem:[%s288 + $0x8] sm:$0xff]
        %v362 = vld [vmem:[%s288 + $0x10] sm:$0xff]
        %v363 = vld [vmem:[%s288 + $0x18] sm:$0xff]
        %v364 = vld [vmem:[%s297] sm:$0xff]
        %v365 = vld [vmem:[%s306] sm:$0xff]
        %vm366 = vcmp.eq.s32.totalorder %v364, 0
        %v367 = vsel %vm366, 1, 0
        %v368 = vcvt.s32.f32 %v367
        %v369 = vmul.f32 %v368, 0.9
        %v370 = vadd.f32 %v369, 0.025
        %v371 = vmax.f32 %v360, 0.0
        %v372 = vmul.f32 %v360, %v370
        %v373 = vsub.f32 %v371, %v372
        %v374 = vand.u32 2147483647, %v360
        %v375 = vsub.f32 0.0, %v374
        %v376 = vmul.f32 %v375, 1.442695
        %v377 = vpow.pop %v376
        %v378 = vadd.f32 %v377, 1.0
        %v379 = vlog2.pop %v378
        %v380 = vmul.f32 %v379, 0.6931472
        %v381 = vadd.f32 %v373, %v380
        %v382 = vsub.f32 0.0, %v381
        %v383 = vmul.f32 %v382, 1.442695
        %v384 = vpow.pop %v383
        %v385 = vsub.f32 1.0, %v384
        %v386 = vmul.f32 %v385, %v385
        %v387 = vmul.f32 %v386, %v381
        %v388 = vsub.f32 0.0, %v360
        %v389 = vmul.f32 %v388, 1.442695
        %v390 = vpow.pop %v389
        %v391 = vadd.f32 %v390, 1.0
        %v392 = vrcp.pop %v391
        %v393 = vmul.f32 1.0, %v392
        %v394 = vadd.f32 %v393, %v368
        %v395 = vadd.f32 %v394, 1e-05
        %v396 = vrcp.pop %v395
        %v397 = vmul.f32 %v393, 2.0
        %v398 = vmul.f32 %v397, %v368
        %v399 = vadd.f32 %v398, 1e-05
        %v400 = vmul.f32 %v399, %v396
        %v401 = vsub.f32 1.0, %v400
        %v402 = vmul.f32 %v401, 0.2
        %vm403 = vcmp.eq.s32.totalorder %v364, 1
        %v404 = vsel %vm403, 1, 0
        %v405 = vcvt.s32.f32 %v404
        %v406 = vmul.f32 %v405, 0.9
        %v407 = vadd.f32 %v406, 0.025
        %v408 = vmax.f32 %v361, 0.0
        %v409 = vmul.f32 %v361, %v407
        %v410 = vsub.f32 %v408, %v409
        %v411 = vand.u32 2147483647, %v361
        %v412 = vsub.f32 0.0, %v411
        %v413 = vmul.f32 %v412, 1.442695
        %v414 = vpow.pop %v413
        %v415 = vadd.f32 %v414, 1.0
        %v416 = vlog2.pop %v415
        %v417 = vmul.f32 %v416, 0.6931472
        %v418 = vadd.f32 %v410, %v417
        %v419 = vsub.f32 0.0, %v418
        %v420 = vmul.f32 %v419, 1.442695
        %v421 = vpow.pop %v420
        %v422 = vsub.f32 1.0, %v421
        %v423 = vmul.f32 %v422, %v422
        %v424 = vmul.f32 %v423, %v418
        %v425 = vadd.f32 %v387, %v424
        %v426 = vsub.f32 0.0, %v361
        %v427 = vmul.f32 %v426, 1.442695
        %v428 = vpow.pop %v427
        %v429 = vadd.f32 %v428, 1.0
        %v430 = vrcp.pop %v429
        %v431 = vmul.f32 1.0, %v430
        %v432 = vadd.f32 %v431, %v405
        %v433 = vadd.f32 %v432, 1e-05
        %v434 = vrcp.pop %v433
        %v435 = vmul.f32 %v431, 2.0
        %v436 = vmul.f32 %v435, %v405
        %v437 = vadd.f32 %v436, 1e-05
        %v438 = vmul.f32 %v437, %v434
        %v439 = vsub.f32 1.0, %v438
        %v440 = vmul.f32 %v439, 0.4
        %v441 = vadd.f32 %v402, %v440
        %vm442 = vcmp.eq.s32.totalorder %v364, 2
        %v443 = vsel %vm442, 1, 0
        %v444 = vcvt.s32.f32 %v443
        %v445 = vmul.f32 %v444, 0.9
        %v446 = vadd.f32 %v445, 0.025
        %v447 = vmax.f32 %v362, 0.0
        %v448 = vmul.f32 %v362, %v446
        %v449 = vsub.f32 %v447, %v448
        %v450 = vand.u32 2147483647, %v362
        %v451 = vsub.f32 0.0, %v450
        %v452 = vmul.f32 %v451, 1.442695
        %v453 = vpow.pop %v452
        %v454 = vadd.f32 %v453, 1.0
        %v455 = vlog2.pop %v454
        %v456 = vmul.f32 %v455, 0.6931472
        %v457 = vadd.f32 %v449, %v456
        %v458 = vsub.f32 0.0, %v457
        %v459 = vmul.f32 %v458, 1.442695
        %v460 = vpow.pop %v459
        %v461 = vsub.f32 1.0, %v460
        %v462 = vmul.f32 %v461, %v461
        %v463 = vmul.f32 %v462, %v457
        %v464 = vadd.f32 %v425, %v463
        %v465 = vsub.f32 0.0, %v362
        %v466 = vmul.f32 %v465, 1.442695
        %v467 = vpow.pop %v466
        %v468 = vadd.f32 %v467, 1.0
        %v469 = vrcp.pop %v468
        %v470 = vmul.f32 1.0, %v469
        %v471 = vadd.f32 %v470, %v444
        %v472 = vadd.f32 %v471, 1e-05
        %v473 = vrcp.pop %v472
        %v474 = vmul.f32 %v470, 2.0
        %v475 = vmul.f32 %v474, %v444
        %v476 = vadd.f32 %v475, 1e-05
        %v477 = vmul.f32 %v476, %v473
        %v478 = vsub.f32 1.0, %v477
        %v479 = vmul.f32 %v478, 0.1
        %v480 = vadd.f32 %v441, %v479
        %vm481 = vcmp.eq.s32.totalorder %v364, 3
        %v482 = vsel %vm481, 1, 0
        %v483 = vcvt.s32.f32 %v482
        %v484 = vmul.f32 %v483, 0.9
        %v485 = vadd.f32 %v484, 0.025
        %v486 = vmax.f32 %v363, 0.0
        %v487 = vmul.f32 %v363, %v485
        %v488 = vsub.f32 %v486, %v487
        %v489 = vand.u32 2147483647, %v363
        %v490 = vsub.f32 0.0, %v489
        %v491 = vmul.f32 %v490, 1.442695
        %v492 = vpow.pop %v491
        %v493 = vadd.f32 %v492, 1.0
        %v494 = vlog2.pop %v493
        %v495 = vmul.f32 %v494, 0.6931472
        %v496 = vadd.f32 %v488, %v495
        %v497 = vsub.f32 0.0, %v496
        %v498 = vmul.f32 %v497, 1.442695
        %v499 = vpow.pop %v498
        %v500 = vsub.f32 1.0, %v499
        %v501 = vmul.f32 %v500, %v500
        %v502 = vmul.f32 %v501, %v496
        %v503 = vadd.f32 %v464, %v502
        %v504 = vsub.f32 0.0, %v363
        %v505 = vmul.f32 %v504, 1.442695
        %v506 = vpow.pop %v505
        %v507 = vadd.f32 %v506, 1.0
        %v508 = vrcp.pop %v507
        %v509 = vmul.f32 1.0, %v508
        %v510 = vadd.f32 %v509, %v483
        %v511 = vadd.f32 %v510, 1e-05
        %v512 = vrcp.pop %v511
        %v513 = vmul.f32 %v509, 2.0
        %v514 = vmul.f32 %v513, %v483
        %v515 = vadd.f32 %v514, 1e-05
        %v516 = vmul.f32 %v515, %v512
        %v517 = vsub.f32 1.0, %v516
        %v518 = vmul.f32 %v517, 0.3
        %v519 = vadd.f32 %v480, %v518
        %v520 = vld [vmem:[%s338] sm:$0xff]
        %v521 = vmul.f32 %v503, %v365
        %v522 = vadd.f32 %v520, %v521
        %523 = vst [vmem:[%s338] sm:$0xff] %v522
        %v524 = vld [vmem:[%s345] sm:$0xff]
        %v525 = vmul.f32 %v519, %v365
        %v526 = vadd.f32 %v524, %v525
        %527 = vst [vmem:[%s345] sm:$0xff] %v526
        %v528 = vld [vmem:[%s352] sm:$0xff]
        %v529 = vadd.f32 %v528, %v365
        %530 = vst [vmem:[%s352] sm:$0xff] %v529
        %s531 = sand.u32 %s133, 1
        %s532 = scalar_lea.sflag [#allocation4], %s531
        %s533 = sand.u32 %s133, 1
        %s534 = smul.addr %s533, 8
        %s535 = scalar_lea.vmem [#allocation8], %s534
        %s536 = sand.u32 %s29, 1
        %s537 = scalar_lea.sflag [#allocation10], %s536
        %s538 = sand.u32 %s159, 1
        %s539 = smul.addr %s538, 8
        %s540 = scalar_lea.vmem [#allocation9], %s539
        %s541 = sand.u32 %s29, 1
        %s542 = scalar_lea.sflag [#allocation10], %s541
        %s543 = sand.u32 %s185, 1
        %s544 = smul.addr %s543, 8
        %s545 = scalar_lea.vmem [#allocation11], %s544
        // Predicated region
        $region49: #{tpu_custom_call.1} parent=31 // pred_check
          %p546 = pneg %p143
        $region50: #{tpu_custom_call.1} parent=31 // pred_check_branch
          %548 = sbr.rel (%p546) target = $region52
        $region51: #{tpu_custom_call.1} parent=31 // pred_region
          %s550 = ssub.s32 128, 128
          %551 = vsyncadd %s532, %s550
          %s552 = smul.addr %s33, 128
          %s553 = scalar_lea.hbm %s3, %s552
          %s555 = sshll.u32 %s535, 4
          %s556 = int_to_ptr.vmem [resolvable:$true] %s555
          %558 = dma.vmem_to_hbm [thread:$0]  %s556, 128, %s553, %s532
        $region52: #{tpu_custom_call.1} parent=31 // pred_fallthru
          _
        // Predicated region
        $region53: #{tpu_custom_call.1} parent=31 // pred_check
          %p559 = pneg %p169
        $region54: #{tpu_custom_call.1} parent=31 // pred_check_branch
          %561 = sbr.rel (%p559) target = $region56
        $region55: #{tpu_custom_call.1} parent=31 // pred_region
          %s563 = ssub.s32 128, 128
          %564 = vsyncadd %s537, %s563
          %s565 = smul.addr %s33, 128
          %s566 = scalar_lea.hbm %s4, %s565
          %s568 = sshll.u32 %s540, 4
          %s569 = int_to_ptr.vmem [resolvable:$true] %s568
          %571 = dma.vmem_to_hbm [thread:$0]  %s569, 128, %s566, %s537
        $region56: #{tpu_custom_call.1} parent=31 // pred_fallthru
          _
        // Predicated region
        $region57: #{tpu_custom_call.1} parent=31 // pred_check
          %p572 = pneg %p195
        $region58: #{tpu_custom_call.1} parent=31 // pred_check_branch
          %574 = sbr.rel (%p572) target = $region60
        $region59: #{tpu_custom_call.1} parent=31 // pred_region
          %s576 = ssub.s32 128, 128
          %577 = vsyncadd %s542, %s576
          %s578 = smul.addr %s33, 128
          %s579 = scalar_lea.hbm %s5, %s578
          %s581 = sshll.u32 %s545, 4
          %s582 = int_to_ptr.vmem [resolvable:$true] %s581
          %584 = dma.vmem_to_hbm [thread:$0]  %s582, 128, %s579, %s542
        $region60: #{tpu_custom_call.1} parent=31 // pred_fallthru
          _
      $region32: #{tpu_custom_call.1} parent=5 // pred_fallthru
        _
      %p585 = scmp.le.s32.totalorder 2, %s24
      // Predicated region
      $region61: #{tpu_custom_call.1} parent=5 // pred_check
        %p586 = pneg %p585
      $region62: #{tpu_custom_call.1} parent=5 // pred_check_branch
        %588 = sbr.rel (%p586) target = $region64
      $region63: #{tpu_custom_call.1} parent=5 // pred_region
        %s589 = ssub.s32 %s24, 2
        // Predicated region
        $region65: #{tpu_custom_call.1} parent=63 // pred_check
          %p590 = pneg %p149
        $region66: #{tpu_custom_call.1} parent=63 // pred_check_branch
          %592 = sbr.rel (%p590) target = $region68
        $region67: #{tpu_custom_call.1} parent=63 // pred_region
          %s593 = sand.u32 %s134, 1
          %s594 = scalar_lea.sflag [#allocation4], %s593
          %s595 = sand.u32 %s134, 1
          %s596 = smul.addr %s595, 8
          %s597 = scalar_lea.vmem [#allocation8], %s596
          %598 = dma.done %s594, 128
        $region68: #{tpu_custom_call.1} parent=63 // pred_fallthru
          _
        // Predicated region
        $region69: #{tpu_custom_call.1} parent=63 // pred_check
          %p599 = pneg %p175
        $region70: #{tpu_custom_call.1} parent=63 // pred_check_branch
          %601 = sbr.rel (%p599) target = $region72
        $region71: #{tpu_custom_call.1} parent=63 // pred_region
          %s602 = sand.u32 %s30, 1
          %s603 = scalar_lea.sflag [#allocation10], %s602
          %s604 = sand.u32 %s160, 1
          %s605 = smul.addr %s604, 8
          %s606 = scalar_lea.vmem [#allocation9], %s605
          %607 = dma.done %s603, 128
        $region72: #{tpu_custom_call.1} parent=63 // pred_fallthru
          _
        // Predicated region
        $region73: #{tpu_custom_call.1} parent=63 // pred_check
          %p608 = pneg %p201
        $region74: #{tpu_custom_call.1} parent=63 // pred_check_branch
          %610 = sbr.rel (%p608) target = $region76
        $region75: #{tpu_custom_call.1} parent=63 // pred_region
          %s611 = sand.u32 %s30, 1
          %s612 = scalar_lea.sflag [#allocation10], %s611
          %s613 = sand.u32 %s186, 1
          %s614 = smul.addr %s613, 8
          %s615 = scalar_lea.vmem [#allocation11], %s614
          %616 = dma.done %s612, 128
        $region76: #{tpu_custom_call.1} parent=63 // pred_fallthru
          _
      $region64: #{tpu_custom_call.1} parent=5 // pred_fallthru
        _
    $region6: #{tpu_custom_call.1} parent=1 // loop_footer
      %s28 = sadd.s32 1, %s24
    $region7: #{tpu_custom_call.1} parent=1 // loop_footer_branch
      %23 = sbr.rel target = $region3
    $region8: #{tpu_custom_call.1} parent=1 // loop_exit
      _
    %617 = vsyncpa [#allocation3], 1
    %s618 = scalar_lea.sflag [#allocation3], 1
    %619 = vsyncpa %s618, 1
    %620 = vsyncpa [#allocation6], 1
    %s621 = scalar_lea.sflag [#allocation6], 1
    %622 = vsyncpa %s621, 1
    %623 = vsyncpa [#allocation4], 1
    %s624 = scalar_lea.sflag [#allocation4], 1
    %625 = vsyncpa %s624, 1
    %626 = vsyncpa [#allocation10], 1
    %s627 = scalar_lea.sflag [#allocation10], 1
    %628 = vsyncpa %s627, 1

</llo_original>
